<compile_context>
chip_gen: v7x
topology: tpu7x:2x2x1
jax: 0.10.0
libtpu: 0.0.40
codegen_flags: <defaults>
</compile_context>

<pallas_src>
import math

import jax
import jax.numpy as jnp
import numpy as np
from jax.experimental import pallas as pl
from jax.experimental.pallas import tpu as pltpu

_MIB = 1024 * 1024


# ---------------------------------------------------------------------------
# Kernels
# ---------------------------------------------------------------------------

def _fused_kernel(x_ref, w_ref, b_ref, o_ref):
    """Resident-weight path: (TM, D) @ (D, V) + full-row log-softmax."""
    # Native-dtype operands into the MXU; accumulate in f32.
    logits = jnp.dot(x_ref[...], w_ref[...], preferred_element_type=jnp.float32)
    logits = logits + b_ref[...].astype(jnp.float32)          # (1, V) broadcast
    m = jnp.max(logits, axis=-1, keepdims=True)
    shifted = logits - m
    lse = jnp.log(jnp.sum(jnp.exp(shifted), axis=-1, keepdims=True))
    o_ref[...] = (shifted - lse).astype(o_ref.dtype)


def _lse_kernel(x_ref, w_ref, b_ref, lse_ref, m_sc, l_sc):
    """Vocab-tiled pass 1: streaming online max / logsumexp over vocab tiles."""
    j = pl.program_id(1)

    @pl.when(j == 0)
    def _():
        m_sc[...] = jnp.full(m_sc.shape, -jnp.inf, m_sc.dtype)
        l_sc[...] = jnp.zeros_like(l_sc)

    logits = jnp.dot(x_ref[...], w_ref[...], preferred_element_type=jnp.float32)
    logits = logits + b_ref[...].astype(jnp.float32)
    m_new = jnp.maximum(m_sc[...], jnp.max(logits, axis=-1, keepdims=True))
    alpha = jnp.exp(m_sc[...] - m_new)
    l_sc[...] = alpha * l_sc[...] + jnp.sum(
        jnp.exp(logits - m_new), axis=-1, keepdims=True)
    m_sc[...] = m_new

    @pl.when(j == pl.num_programs(1) - 1)
    def _():
        lse_ref[...] = m_sc[...] + jnp.log(l_sc[...])


def _normalize_kernel(x_ref, w_ref, b_ref, lse_ref, o_ref):
    """Vocab-tiled pass 2: recompute the logit tile and subtract the row LSE."""
    logits = jnp.dot(x_ref[...], w_ref[...], preferred_element_type=jnp.float32)
    logits = logits + b_ref[...].astype(jnp.float32)
    o_ref[...] = (logits - lse_ref[...]).astype(o_ref.dtype)


# ---------------------------------------------------------------------------
# Planning helpers
# ---------------------------------------------------------------------------

def _vmem_budget_bytes():
    """Generation-aware usable VMEM (v7x: 64 MiB, v5e/v6e: 128 MiB parts)."""
    try:
        cap = int(pltpu.get_tpu_info().vmem_capacity_bytes)
    except Exception:  # conservative fallback (v7x-sized)
        cap = 64 * _MIB
    return max(min(int(cap * 0.82), cap - 8 * _MIB), 16 * _MIB)


def _row_tile_candidates(M):
    if M <= 512:
        return [M]                       # single full-extent row block (legal)
    # MXU-aligned (multiples of 256/128), down to the 8-sublane minimum.
    return [t for t in (1024, 512, 256, 128, 64, 32, 16, 8) if t <= M]


def _choose_plan(M, D, Vp, xb, wb, ob, budget):
    f32 = 4
    # Resident-weight plan.  Pallas double-buffers every pipelined input even
    # with a constant index_map, so the weight/bias footprint is counted 2x.
    # TODO(synk): pin weight/bias to one buffer with pipeline_mode=pl.Buffered(1)
    # once that lowering is universally available; halves the resident footprint.
    w_resident = 2 * D * Vp * wb + 2 * 8 * Vp * wb
    for tm in _row_tile_candidates(M):
        need = (w_resident
                + 2 * tm * D * xb              # double-buffered x tiles
                + 2 * tm * Vp * ob             # double-buffered output tiles
                + 3 * tm * Vp * f32)           # f32 logits/exp temporaries
        if need <= budget:
            return "resident", tm, None
    # Vocab-tiled two-pass plan (streamed (D, TV) weight blocks).
    for tv in (2048, 1024, 512, 256, 128):
        if tv > Vp or Vp % tv:
            continue
        for tm in _row_tile_candidates(M):
            need = (2 * tm * D * xb
                    + 2 * D * tv * wb + 2 * 8 * tv * wb
                    + 2 * tm * tv * ob
                    + 3 * tm * tv * f32
                    + 4 * tm * f32)            # lse output + m/l scratch
            if need <= budget:
                return "vocab", tm, tv
    raise ValueError("No tiling fits the VMEM budget; reduce d_model tile size.")


def linear_params_to_kernel_layout(weight, bias):
    """Convert nn.Linear params (weight: (V, D), bias: (V,)) to the kernel's
    pre-transposed (D, V) layout.  Call ONCE at init, never per forward call."""
    return jnp.transpose(weight), bias


# ---------------------------------------------------------------------------
# Wrapper
# ---------------------------------------------------------------------------

def projection_layer(x, w_t, bias, *, out_dtype=None,
                     force_vocab_tiled=False, tile_m=None, tile_v=None):
    """log_softmax(x @ w_t + bias, axis=-1) on TPU via Pallas.

    x:    (..., d_model)
    w_t:  (d_model, vocab)  -- pre-transposed nn.Linear weight (lane-dense vocab)
    bias: (vocab,)
    """
    if out_dtype is None:
        out_dtype = x.dtype
    orig_lead = x.shape[:-1]
    D = x.shape[-1]
    V = w_t.shape[1]
    M = int(math.prod(orig_lead)) if orig_lead else 1

    x2 = x.reshape(M, D)

    # Keep output stores lane-dense: pad vocab to a multiple of 128; padded
    # bias columns get a large negative so they contribute ~0 to the LSE.
    Vp = ((V + 127) // 128) * 128
    if Vp != V:
        w_t = jnp.pad(w_t, ((0, 0), (0, Vp - V)))
        bias = jnp.pad(bias, (0, Vp - V), constant_values=-1e30)
    b2 = bias.reshape(1, Vp)

    xb = x2.dtype.itemsize
    wb = w_t.dtype.itemsize
    ob = np.dtype(out_dtype).itemsize
    budget = _vmem_budget_bytes()

    plan, tm_auto, tv_auto = _choose_plan(M, D, Vp, xb, wb, ob, budget)
    if force_vocab_tiled:
        plan = "vocab"
    tm = int(tile_m) if tile_m is not None else tm_auto
    if plan == "vocab":
        if tile_v is not None:
            tv = int(tile_v)
        elif tv_auto is not None:
            tv = tv_auto
        else:
            tv = 512 if Vp % 512 == 0 else 128
        assert Vp % tv == 0, "tile_v must divide the 128-padded vocab size"

    # Row padding only when tm does not divide M (padded rows are sliced off).
    m_pad = ((M + tm - 1) // tm) * tm
    if m_pad != M:
        x2 = jnp.pad(x2, ((0, m_pad - M), (0, 0)))
    n_row = m_pad // tm

    if plan == "resident":
        out = pl.pallas_call(
            _fused_kernel,
            out_shape=jax.ShapeDtypeStruct((m_pad, Vp), out_dtype),
            grid=(n_row,),
            in_specs=[
                pl.BlockSpec((tm, D), lambda i: (i, 0)),    # streamed row tiles
                pl.BlockSpec((D, Vp), lambda i: (0, 0)),    # weight: VMEM-resident
                pl.BlockSpec((1, Vp), lambda i: (0, 0)),    # bias:   VMEM-resident
            ],
            out_specs=pl.BlockSpec((tm, Vp), lambda i: (i, 0)),
            compiler_params=pltpu.CompilerParams(
                dimension_semantics=("parallel",),
                vmem_limit_bytes=budget,
            ),
        )(x2, w_t, b2)
    else:
        n_voc = Vp // tv
        # Pass 1: per-row logsumexp, streaming (D, tv) weight tiles.
        lse = pl.pallas_call(
            _lse_kernel,
            out_shape=jax.ShapeDtypeStruct((m_pad, 1), jnp.float32),
            grid=(n_row, n_voc),
            in_specs=[
                pl.BlockSpec((tm, D), lambda i, j: (i, 0)),
                pl.BlockSpec((D, tv), lambda i, j: (0, j)),
                pl.BlockSpec((1, tv), lambda i, j: (0, j)),
            ],
            out_specs=pl.BlockSpec((tm, 1), lambda i, j: (i, 0)),
            scratch_shapes=[pltpu.VMEM((tm, 1), jnp.float32),
                            pltpu.VMEM((tm, 1), jnp.float32)],
            compiler_params=pltpu.CompilerParams(
                dimension_semantics=("parallel", "arbitrary"),
                vmem_limit_bytes=budget,
            ),
        )(x2, w_t, b2)
        # Pass 2: recompute each logit tile and subtract the row LSE.
        out = pl.pallas_call(
            _normalize_kernel,
            out_shape=jax.ShapeDtypeStruct((m_pad, Vp), out_dtype),
            grid=(n_row, n_voc),
            in_specs=[
                pl.BlockSpec((tm, D), lambda i, j: (i, 0)),
                pl.BlockSpec((D, tv), lambda i, j: (0, j)),
                pl.BlockSpec((1, tv), lambda i, j: (0, j)),
                pl.BlockSpec((tm, 1), lambda i, j: (i, 0)),
            ],
            out_specs=pl.BlockSpec((tm, tv), lambda i, j: (i, j)),
            compiler_params=pltpu.CompilerParams(
                dimension_semantics=("parallel", "parallel"),
                vmem_limit_bytes=budget,
            ),
        )(x2, w_t, b2, lse)

    if m_pad != M:
        out = out[:M]
    if Vp != V:
        out = out[:, :V]
    return out.reshape(orig_lead + (V,))


# ---------------------------------------------------------------------------
# Demo / correctness check
# ---------------------------------------------------------------------------

if __name__ == "__main__":
    key = jax.random.PRNGKey(0)
    B, S, D, V = 2, 8, 32, 128        # batch, seq, d_model, vocab (lane-dense)

    kx, kw, kb = jax.random.split(key, 3)
    x = jax.random.normal(kx, (B, S, D), dtype=jnp.float32)
    bound = 1.0 / math.sqrt(D)
    weight = jax.random.uniform(kw, (V, D), jnp.float32, -bound, bound)   # nn.Linear layout
    bias = jax.random.uniform(kb, (V,), jnp.float32, -bound, bound)

    # One-time (init) layout conversion; per-call wrapper never transposes.
    w_t, b = linear_params_to_kernel_layout(weight, bias)

    ref = jax.nn.log_softmax(jnp.einsum("bsd,vd->bsv", x, weight) + bias, axis=-1)

    # 1) Resident-weight fused path (weight fits comfortably in VMEM).
    out = jax.block_until_ready(projection_layer(x, w_t, b))
    assert out.shape == (B, S, V)
    assert jnp.allclose(out, ref, atol=1e-5, rtol=1e-5)

    # 2) Streamed row tiles (multi-step "parallel" row grid).
    out2 = jax.block_until_ready(projection_layer(x, w_t, b, tile_m=8))
    assert jnp.allclose(out2, ref, atol=1e-5, rtol=1e-5)

    # 3) Vocab-tiled online-logsumexp path (the large-vocab / v7x plan),
    #    exercised on a small shape by forcing 128-wide vocab tiles.
    V2 = 256
    kw2, kb2 = jax.random.split(kw)
    weight2 = jax.random.uniform(kw2, (V2, D), jnp.float32, -bound, bound)
    bias2 = jax.random.uniform(kb2, (V2,), jnp.float32, -bound, bound)
    w2_t, b2v = linear_params_to_kernel_layout(weight2, bias2)
    ref2 = jax.nn.log_softmax(jnp.einsum("bsd,vd->bsv", x, weight2) + bias2, axis=-1)
    out3 = jax.block_until_ready(
        projection_layer(x, w2_t, b2v, force_vocab_tiled=True, tile_v=128))
    assert jnp.allclose(out3, ref2, atol=1e-5, rtol=1e-5)

    print("KERNEL_OK")
</pallas_src>

<mosaic_0001>
module attributes {stable_mosaic.version = 11 : i64} {
  func.func @_fused_kernel(%arg0: i32, %arg1: memref<16x32xf32, #tpu.memory_space<vmem>>, %arg2: memref<32x128xf32, #tpu.memory_space<vmem>>, %arg3: memref<1x128xf32, #tpu.memory_space<vmem>>, %arg4: memref<16x128xf32, #tpu.memory_space<vmem>>) attributes {dimension_semantics = [#tpu.dimension_semantics<parallel>], iteration_bounds = array<i64: 1>, scalar_prefetch = 0 : i64, scratch_operands = 0 : i64, tpu.core_type = #tpu.core_type<tc>, window_params = [{transform_indices = @transform_0, window_bounds = array<i64: 16, 32>}, {pipeline_mode = #tpu.pipeline_mode<synchronous>, transform_indices = @transform_1, window_bounds = array<i64: 32, 128>}, {pipeline_mode = #tpu.pipeline_mode<synchronous>, transform_indices = @transform_2, window_bounds = array<i64: 1, 128>}, {transform_indices = @transform_3, window_bounds = array<i64: 16, 128>}]} {
    %c0 = arith.constant 0 : index
    %c0_0 = arith.constant 0 : index
    %0 = vector.load %arg1[%c0, %c0_0] : memref<16x32xf32, #tpu.memory_space<vmem>>, vector<16x32xf32>
    %c0_1 = arith.constant 0 : index
    %c0_2 = arith.constant 0 : index
    %1 = vector.load %arg2[%c0_1, %c0_2] : memref<32x128xf32, #tpu.memory_space<vmem>>, vector<32x128xf32>
    %cst = arith.constant dense<0.000000e+00> : vector<16x128xf32>
    %2 = tpu.matmul %0, %1, %cst {dimension_numbers = #tpu.dot_dimension_numbers<[1], [0], [0], [1], [0, 0, 1, 1], [], []>} : vector<16x32xf32>, vector<32x128xf32>, vector<16x128xf32> -> vector<16x128xf32>
    %c0_3 = arith.constant 0 : index
    %c0_4 = arith.constant 0 : index
    %3 = vector.load %arg3[%c0_3, %c0_4] : memref<1x128xf32, #tpu.memory_space<vmem>>, vector<1x128xf32>
    %4 = vector.broadcast %3 : vector<1x128xf32> to vector<16x128xf32>
    %5 = arith.addf %2, %4 : vector<16x128xf32>
    %cst_5 = arith.constant dense<0xFF800000> : vector<16xf32>
    %6 = vector.multi_reduction <maximumf>, %5, %cst_5 [1] : vector<16x128xf32> to vector<16xf32>
    %7 = vector.shape_cast %6 : vector<16xf32> to vector<16x1xf32>
    %8 = vector.broadcast %7 : vector<16x1xf32> to vector<16x128xf32>
    %9 = arith.subf %5, %8 : vector<16x128xf32>
    %10 = math.exp %9 : vector<16x128xf32>
    %cst_6 = arith.constant dense<0.000000e+00> : vector<16xf32>
    %11 = vector.multi_reduction <add>, %10, %cst_6 [1] : vector<16x128xf32> to vector<16xf32>
    %12 = vector.shape_cast %11 : vector<16xf32> to vector<16x1xf32>
    %13 = math.log %12 : vector<16x1xf32>
    %14 = vector.broadcast %13 : vector<16x1xf32> to vector<16x128xf32>
    %15 = arith.subf %9, %14 : vector<16x128xf32>
    %c0_7 = arith.constant 0 : index
    %c0_8 = arith.constant 0 : index
    %16 = vector.load %arg4[%c0_7, %c0_8] : memref<16x128xf32, #tpu.memory_space<vmem>>, vector<16x128xf32>
    tpu.vector_store %arg4[%c0_7, %c0_8], %15 {strides = array<i32>} : memref<16x128xf32, #tpu.memory_space<vmem>>, vector<16x128xf32>,
    return
  }
  func.func @transform_0(%arg0: i32) -> (i32, i32) {
    %c0_i32 = arith.constant 0 : i32
    %c0_i32_0 = arith.constant 0 : i32
    return %arg0, %c0_i32 : i32, i32
  }
  func.func @transform_1(%arg0: i32) -> (i32, i32) {
    %c0_i32 = arith.constant 0 : i32
    %c0_i32_0 = arith.constant 0 : i32
    %c0_i32_1 = arith.constant 0 : i32
    return %c0_i32, %c0_i32_0 : i32, i32
  }
  func.func @transform_2(%arg0: i32) -> (i32, i32) {
    %c0_i32 = arith.constant 0 : i32
    %c0_i32_0 = arith.constant 0 : i32
    %c0_i32_1 = arith.constant 0 : i32
    return %c0_i32, %c0_i32_0 : i32, i32
  }
  func.func @transform_3(%arg0: i32) -> (i32, i32) {
    %c0_i32 = arith.constant 0 : i32
    %c0_i32_0 = arith.constant 0 : i32
    return %arg0, %c0_i32 : i32, i32
  }
}

</mosaic_0001>

<llo_original>
// kernel: tpu_custom_call.1
$region0: #{tpu_custom_call.1}
  #allocation0 [shape = 'u32[]', space=smem, size = 0x4, offset = 0x4, fixed_abs, tag = 'smem constant byte address 0x4 - core index']
  #allocation1 [shape = 'u32[144,128]{1,0:T(1,128)}', space=vmem, size = 0x12000, scoped, tag = 'internal scratch']
  %s0 = inlined_call_operand.hbm [shape: f32[16,32], index: 0, kind: input, shape index: {}]
  %s1 = inlined_call_operand.hbm [shape: f32[32,128], index: 1, kind: input, shape index: {}]
  %s2 = inlined_call_operand.vmem [shape: f32[1,128], index: 2, kind: input, shape index: {}]
  %s3 = inlined_call_operand.hbm [shape: f32[16,128], index: 3, kind: output, shape index: {}]
  %s4 = sld [smem:[#allocation0]]
  $region30: #{tpu_custom_call.1} parent=0
    _
  %s6 = ssub.s32 1, %s4
  %s7 = scalar_select 0, %s6, %s4
  $region1: #{tpu_custom_call.1} parent=0
    #allocation2 [shape = 'u8[8192]{0}', space=vmem, size = 0x2000, scoped, tag = 'input window, operand 0, single buffered']
    #allocation3 [shape = 's32[1]{0}', space=sflag, size = 0x4, scoped, tag = 'scoped memory for tpu_custom_call.1']
    #allocation4 [shape = 's32[1]{0}', space=sflag, size = 0x4, scoped, tag = 'scoped memory for tpu_custom_call.1']
    #allocation5 [shape = 'u8[16384]{0}', space=vmem, size = 0x4000, scoped, tag = 'input window, operand 1, single buffered']
    #allocation6 [shape = 's32[1]{0}', space=sflag, size = 0x4, scoped, tag = 'scoped memory for tpu_custom_call.1']
    #allocation7 [shape = 'u8[8192]{0}', space=vmem, size = 0x2000, scoped, tag = 'output window, operand 0, single buffered']
    %8 = vsyncpa [#allocation3], 0
    %9 = vsyncpa [#allocation6], 0
    %10 = vsyncpa [#allocation4], 0
    // Predicated region
    $region2: #{tpu_custom_call.1} parent=1 // pred_check
      _
    $region3: #{tpu_custom_call.1} parent=1 // pred_check_branch
      %12 = sbr.rel (0) target = $region5
    $region4: #{tpu_custom_call.1} parent=1 // pred_region
      %s14 = ssub.s32 256, 256
      %15 = vsyncadd [#allocation3], %s14
      %s16 = sshll.u32 [#allocation2], 4
      %s17 = int_to_ptr.vmem [resolvable:$true] %s16
      %22 = dma.hbm_to_vmem [thread:$0]  %s0, 256, %s17, [#allocation3], 128, 128, 8
    $region5: #{tpu_custom_call.1} parent=1 // pred_fallthru
      _
    // Predicated region
    $region6: #{tpu_custom_call.1} parent=1 // pred_check
      _
    $region7: #{tpu_custom_call.1} parent=1 // pred_check_branch
      %24 = sbr.rel (0) target = $region9
    $region8: #{tpu_custom_call.1} parent=1 // pred_region
      %s26 = ssub.s32 512, 512
      %27 = vsyncadd [#allocation6], %s26
      %s28 = sshll.u32 [#allocation5], 4
      %s29 = int_to_ptr.vmem [resolvable:$true] %s28
      %34 = dma.hbm_to_vmem [thread:$0]  %s1, 512, %s29, [#allocation6], 128, 128, 8
    $region9: #{tpu_custom_call.1} parent=1 // pred_fallthru
      _
    // Predicated region
    $region10: #{tpu_custom_call.1} parent=1 // pred_check
      _
    $region11: #{tpu_custom_call.1} parent=1 // pred_check_branch
      %36 = sbr.rel (0) target = $region13
    $region12: #{tpu_custom_call.1} parent=1 // pred_region
      _
    $region13: #{tpu_custom_call.1} parent=1 // pred_fallthru
      _
    // Predicated region
    $region14: #{tpu_custom_call.1} parent=1 // pred_check
      _
    $region15: #{tpu_custom_call.1} parent=1 // pred_check_branch
      %38 = sbr.rel (0) target = $region17
    $region16: #{tpu_custom_call.1} parent=1 // pred_region
      %39 = dma.done [#allocation3], 256
    $region17: #{tpu_custom_call.1} parent=1 // pred_fallthru
      _
    // Predicated region
    $region18: #{tpu_custom_call.1} parent=1 // pred_check
      _
    $region19: #{tpu_custom_call.1} parent=1 // pred_check_branch
      %41 = sbr.rel (0) target = $region21
    $region20: #{tpu_custom_call.1} parent=1 // pred_region
      %42 = dma.done [#allocation6], 512
    $region21: #{tpu_custom_call.1} parent=1 // pred_fallthru
      _
    %v43 = vld [vmem:[#allocation2] sm:$0xff]
    %v44 = vld [vmem:[#allocation2 + $0x8] sm:$0xff]
    %v45 = vld [vmem:[#allocation5] sm:$0xff]
    %v46 = vld [vmem:[#allocation5 + $0x8] sm:$0xff]
    %v47 = vld [vmem:[#allocation5 + $0x10] sm:$0xff]
    %v48 = vld [vmem:[#allocation5 + $0x18] sm:$0xff]
    %v49 = vld [vmem:[%s2] sm:$0x1]
    %v51 = vlaneseq
    %v52 = vshrl.u32 %v51, 7
    %v53 = vsub.s32 0, %v52
    %v54 = vrot.slane %v49, %v53
    %vm56 = vcmask 261120
    %v58 = vsel %vm56, %v43, 0
    %v61 = vsel %vm56, %v44, 0
    %63 = vmatprep.subr.mxu0 0.0
    %64 = vmatpush1.msra.mxu0 %v45
    %65 = vmatprep.subr.mxu0 0.0
    %66 = vmatpush1.msra.mxu0 %v46
    %67 = vmatprep.subr.mxu0 0.0
    %68 = vmatpush1.msra.mxu0 %v47
    %69 = vmatprep.subr.mxu0 0.0
    %70 = vmatpush1.msra.mxu0 %v48
    %71 = vmatprep.subr.mxu0 0.0
    %72 = vmatpush1.msra.mxu0 0.0
    %73 = vmatprep.subr.mxu0 0.0
    %74 = vmatpush1.msra.mxu0 0.0
    %75 = vmatprep.subr.mxu0 0.0
    %76 = vmatpush1.msra.mxu0 0.0
    %77 = vmatprep.subr.mxu0 0.0
    %78 = vmatpush1.msra.mxu0 0.0
    %79 = vmatprep.subr.mxu0 0.0
    %80 = vmatpush1.msra.mxu0 0.0
    %81 = vmatprep.subr.mxu0 0.0
    %82 = vmatpush1.msra.mxu0 0.0
    %83 = vmatprep.subr.mxu0 0.0
    %84 = vmatpush1.msra.mxu0 0.0
    %85 = vmatprep.subr.mxu0 0.0
    %86 = vmatpush1.msra.mxu0 0.0
    %87 = vmatprep.subr.mxu0 0.0
    %88 = vmatpush1.msra.mxu0 0.0
    %89 = vmatprep.subr.mxu0 0.0
    %90 = vmatpush1.msra.mxu0 0.0
    %91 = vmatprep.subr.mxu0 0.0
    %92 = vmatpush1.msra.mxu0 0.0
    %93 = vmatprep.subr.mxu0 0.0
    %94 = vmatpush1.msra.mxu0 0.0
    %95 = vmatprep.subr.mxu0 0.0
    %96 = vmatpush1.msra.mxu0 0.0
    %97 = vmatprep.subr.mxu0 0.0
    %98 = vmatpush1.msra.mxu0 0.0
    %99 = vmatprep.subr.mxu0 0.0
    %100 = vmatpush1.msra.mxu0 0.0
    %101 = vmatprep.subr.mxu0 0.0
    %102 = vmatpush1.msra.mxu0 0.0
    %103 = vmatprep.subr.mxu0 0.0
    %104 = vmatpush1.msra.mxu0 0.0
    %105 = vmatprep.subr.mxu0 0.0
    %106 = vmatpush1.msra.mxu0 0.0
    %107 = vmatprep.subr.mxu0 0.0
    %108 = vmatpush1.msra.mxu0 0.0
    %109 = vmatprep.subr.mxu0 0.0
    %110 = vmatpush1.msra.mxu0 0.0
    %111 = vmatprep.subr.mxu0 0.0
    %112 = vmatpush1.msra.mxu0 0.0
    %113 = vmatprep.subr.mxu0 0.0
    %114 = vmatpush1.msra.mxu0 0.0
    %115 = vmatprep.subr.mxu0 0.0
    %116 = vmatpush1.msra.mxu0 0.0
    %117 = vmatprep.subr.mxu0 0.0
    %118 = vmatpush1.msra.mxu0 0.0
    %119 = vmatprep.subr.mxu0 0.0
    %120 = vmatpush1.msra.mxu0 0.0
    %121 = vmatprep.subr.mxu0 0.0
    %122 = vmatpush1.msra.mxu0 0.0
    %123 = vmatprep.subr.mxu0 0.0
    %124 = vmatpush1.msra.mxu0 0.0
    %125 = vmatprep.subr.mxu0 0.0
    %126 = vmatpush1.msra.mxu0 0.0
    %127 = vmatprep.mubr.f32.mxu0 0.0
    %128 = vmatmul.mubr.f32.gmra.mrb[0].mxu0 %v58
    %v129 = vpop.f32.mrb[0].mxu0
    %v130 = vadd.f32 %v54, %v129
    %v131 = vpop.f32.mrb[0].mxu0
    %132 = vmatprep.mubr.f32.mxu0 0.0
    %133 = vmatmul.mubr.f32.gmra.mrb[0].mxu0 %v61
    %v134 = vpop.f32.mrb[0].mxu0
    %v135 = vadd.f32 %v54, %v134
    %v136 = vpop.f32.mrb[0].mxu0
    %137 = vdwg.mxu0
    %138 = vmax.xlane.f32.xlu0 %v130
    %v139 = vpop.xlane.xlu0 %138
    %140 = vmax.xlane.f32.xlu0 %v135
    %v141 = vpop.xlane.xlu0 %140
    %v142 = vsub.f32 %v130, %v139
    %v143 = vsub.f32 %v135, %v141
    %v144 = vmul.f32 %v142, 1.442695
    %v145 = vpow.pop %v144
    %v146 = vmul.f32 %v143, 1.442695
    %v147 = vpow.pop %v146
    %148 = vadd.xlane.f32.xlu0 %v145
    %v149 = vpop.xlane.xlu0 %148
    %150 = vadd.xlane.f32.xlu0 %v147
    %v151 = vpop.xlane.xlu0 %150
    %v152 = vlog2.pop %v149
    %v153 = vmul.f32 %v152, 0.6931472
    %v154 = vlog2.pop %v151
    %v155 = vmul.f32 %v154, 0.6931472
    %v156 = vsub.f32 %v142, %v153
    %v157 = vsub.f32 %v143, %v155
    %158 = vst [vmem:[#allocation7] sm:$0xff] %v156
    %159 = vst [vmem:[#allocation7 + $0x8] sm:$0xff] %v157
    // Predicated region
    $region22: #{tpu_custom_call.1} parent=1 // pred_check
      _
    $region23: #{tpu_custom_call.1} parent=1 // pred_check_branch
      %161 = sbr.rel (0) target = $region25
    $region24: #{tpu_custom_call.1} parent=1 // pred_region
      %s163 = ssub.s32 256, 256
      %164 = vsyncadd [#allocation4], %s163
      %s165 = sshll.u32 [#allocation7], 4
      %s166 = int_to_ptr.vmem [resolvable:$true] %s165
      %171 = dma.vmem_to_hbm [thread:$0]  %s166, 256, %s3, [#allocation4], 128, 128, 8
    $region25: #{tpu_custom_call.1} parent=1 // pred_fallthru
      _
    // Predicated region
    $region26: #{tpu_custom_call.1} parent=1 // pred_check
      _
    $region27: #{tpu_custom_call.1} parent=1 // pred_check_branch
      %173 = sbr.rel (0) target = $region29
    $region28: #{tpu_custom_call.1} parent=1 // pred_region
      %174 = dma.done [#allocation4], 256
    $region29: #{tpu_custom_call.1} parent=1 // pred_fallthru
      _
    %175 = vsyncpa [#allocation3], 1
    %176 = vsyncpa [#allocation6], 1
    %177 = vsyncpa [#allocation4], 1

</llo_original>
